<compile_context>
chip_gen: v7x
topology: tpu7x:2x2x1
jax: 0.10.0
libtpu: 0.0.40
codegen_flags: <defaults>
</compile_context>

<pallas_src>
import jax
import jax.numpy as jnp
from jax import lax
from jax.experimental import pallas as pl
from jax.experimental.pallas import tpu as pltpu


def _head_kernel(x_ref, w_ref, o_ref):
    # x_ref: (tm, K) activation tile
    # w_ref: (tn, K) weight tile in native [V, K] layout (lane-dense on K)
    # o_ref: (tm, tn) output tile
    o_ref[...] = lax.dot_general(
        x_ref[...],
        w_ref[...],
        dimension_numbers=(((1,), (1,)), ((), ())),  # contract x's K with w's K
        preferred_element_type=jnp.float32,          # f32 accumulation on MXU
    ).astype(o_ref.dtype)


def _round_up(x, m):
    return ((x + m - 1) // m) * m


def naive_head_forward(hidden_states, weight, *, tm=256, tn=512):
    """NaiveHead forward: hidden_states @ weight.T (no bias).

    hidden_states: [..., dim_hidden]
    weight:        [vocab_size, dim_hidden]   (native PyTorch nn.Linear layout)
    returns:       [..., vocab_size]
    """
    *lead, K = hidden_states.shape
    V, K2 = weight.shape
    assert K == K2, "dim_hidden mismatch"

    x = hidden_states.reshape(-1, K)  # [M, K]
    M = x.shape[0]

    itemsize = jnp.dtype(x.dtype).itemsize
    # Sublane multiple for the second-to-last dim: 8 (f32) / 16 (bf16) / 32 (int8).
    sub = 8 * max(1, 4 // itemsize)

    # --- choose / clamp tiles and pad so tiles divide the padded dims ---------
    if M <= tm:
        tm_eff = _round_up(M, sub)
        M_pad = tm_eff
    else:
        tm_eff = _round_up(tm, sub)
        M_pad = _round_up(M, tm_eff)

    if V <= tn:
        tn_eff = _round_up(V, 128)
        V_pad = tn_eff
    else:
        tn_eff = _round_up(tn, 128)
        V_pad = _round_up(V, tn_eff)

    if M_pad != M:
        x = jnp.pad(x, ((0, M_pad - M), (0, 0)))
    w = weight
    if V_pad != V:
        w = jnp.pad(w, ((0, V_pad - V), (0, 0)))

    grid = (M_pad // tm_eff, V_pad // tn_eff)

    # Double-buffered VMEM footprint estimate (x tile + w tile + out tile).
    vmem_bytes = 2 * (tm_eff * K + tn_eff * K + tm_eff * tn_eff) * itemsize
    vmem_bytes = min(max(vmem_bytes + (2 << 20), 4 << 20), 64 << 20)

    cost = pl.CostEstimate(
        flops=2 * M_pad * K * V_pad,
        transcendentals=0,
        bytes_accessed=(M_pad * K + V_pad * K + M_pad * V_pad) * itemsize,
    )

    out = pl.pallas_call(
        _head_kernel,
        out_shape=jax.ShapeDtypeStruct((M_pad, V_pad), hidden_states.dtype),
        grid_spec=pltpu.PrefetchScalarGridSpec(
            num_scalar_prefetch=0,
            grid=grid,
            in_specs=[
                pl.BlockSpec((tm_eff, K), lambda i, j: (i, 0)),  # activation tile
                pl.BlockSpec((tn_eff, K), lambda i, j: (j, 0)),  # native [V,K] weight tile
            ],
            out_specs=pl.BlockSpec((tm_eff, tn_eff), lambda i, j: (i, j)),
        ),
        compiler_params=pltpu.CompilerParams(
            dimension_semantics=("parallel", "parallel"),
            vmem_limit_bytes=vmem_bytes,
        ),
        cost_estimate=cost,
    )(x, w)

    if M_pad != M or V_pad != V:
        out = out[:M, :V]
    return out.reshape(*lead, V)


if __name__ == "__main__":
    # Small shapes consistent with the module: dim_hidden=32, vocab_size=256
    batch, seq, dim_hidden, vocab_size = 2, 8, 32, 256

    key = jax.random.PRNGKey(0)
    k_x, k_w = jax.random.split(key)

    hidden_states = jax.random.normal(k_x, (batch, seq, dim_hidden), dtype=jnp.float32)
    # Deterministic init of the nn.Linear weight [vocab_size, dim_hidden]
    tgt_word_prj_weight = (
        jax.random.normal(k_w, (vocab_size, dim_hidden), dtype=jnp.float32)
        * (1.0 / jnp.sqrt(dim_hidden))
    )

    out = naive_head_forward(hidden_states, tgt_word_prj_weight)
    out = jax.block_until_ready(out)

    # Correctness check against plain JAX reference
    ref = hidden_states @ tgt_word_prj_weight.T
    assert out.shape == (batch, seq, vocab_size)
    assert jnp.allclose(out, ref, atol=1e-5, rtol=1e-5)

    print("KERNEL_OK")
</pallas_src>

<mosaic_0001>
module attributes {stable_mosaic.version = 11 : i64} {
  func.func @_head_kernel(%arg0: i32, %arg1: i32, %arg2: memref<16x32xf32, #tpu.memory_space<vmem>>, %arg3: memref<256x32xf32, #tpu.memory_space<vmem>>, %arg4: memref<16x256xf32, #tpu.memory_space<vmem>>) attributes {dimension_semantics = [#tpu.dimension_semantics<parallel>, #tpu.dimension_semantics<parallel>], iteration_bounds = array<i64: 1, 1>, scalar_prefetch = 0 : i64, scratch_operands = 0 : i64, tpu.core_type = #tpu.core_type<tc>, window_params = [{transform_indices = @transform_0, window_bounds = array<i64: 16, 32>}, {transform_indices = @transform_1, window_bounds = array<i64: 256, 32>}, {transform_indices = @transform_2, window_bounds = array<i64: 16, 256>}]} {
    %c0 = arith.constant 0 : index
    %c0_0 = arith.constant 0 : index
    %0 = vector.load %arg2[%c0, %c0_0] : memref<16x32xf32, #tpu.memory_space<vmem>>, vector<16x32xf32>
    %c0_1 = arith.constant 0 : index
    %c0_2 = arith.constant 0 : index
    %1 = vector.load %arg3[%c0_1, %c0_2] : memref<256x32xf32, #tpu.memory_space<vmem>>, vector<256x32xf32>
    %cst = arith.constant dense<0.000000e+00> : vector<16x256xf32>
    %2 = tpu.matmul %0, %1, %cst {dimension_numbers = #tpu.dot_dimension_numbers<[1], [1], [0], [0], [0, 0, 1, 0], [], []>} : vector<16x32xf32>, vector<256x32xf32>, vector<16x256xf32> -> vector<16x256xf32>
    %c0_3 = arith.constant 0 : index
    %c0_4 = arith.constant 0 : index
    %3 = vector.load %arg4[%c0_3, %c0_4] : memref<16x256xf32, #tpu.memory_space<vmem>>, vector<16x256xf32>
    tpu.vector_store %arg4[%c0_3, %c0_4], %2 {strides = array<i32>} : memref<16x256xf32, #tpu.memory_space<vmem>>, vector<16x256xf32>,
    return
  }
  func.func @transform_0(%arg0: i32, %arg1: i32) -> (i32, i32) {
    %c0_i32 = arith.constant 0 : i32
    %c0_i32_0 = arith.constant 0 : i32
    return %arg0, %c0_i32 : i32, i32
  }
  func.func @transform_1(%arg0: i32, %arg1: i32) -> (i32, i32) {
    %c0_i32 = arith.constant 0 : i32
    %c0_i32_0 = arith.constant 0 : i32
    return %arg1, %c0_i32 : i32, i32
  }
  func.func @transform_2(%arg0: i32, %arg1: i32) -> (i32, i32) {
    %c0_i32 = arith.constant 0 : i32
    return %arg0, %arg1 : i32, i32
  }
}

</mosaic_0001>

<llo_original>
// kernel: tpu_custom_call.1
$region0: #{tpu_custom_call.1}
  #allocation0 [shape = 'u32[]', space=smem, size = 0x4, offset = 0x4, fixed_abs, tag = 'smem constant byte address 0x4 - core index']
  #allocation1 [shape = 'u32[144,128]{1,0:T(1,128)}', space=vmem, size = 0x12000, scoped, tag = 'internal scratch']
  %s0 = inlined_call_operand.vmem [shape: f32[16,32], index: 0, kind: input, shape index: {}]
  %s1 = inlined_call_operand.vmem [shape: f32[256,32], index: 1, kind: input, shape index: {}]
  %s2 = inlined_call_operand.hbm [shape: f32[16,256], index: 2, kind: output, shape index: {}]
  %s3 = sld [smem:[#allocation0]]
  $region18: #{tpu_custom_call.1} parent=0
    _
  %s5 = ssub.s32 1, %s3
  %s6 = scalar_select 0, %s5, %s3
  $region1: #{tpu_custom_call.1} parent=0
    #allocation2 [shape = 'u8[16384]{0}', space=vmem, size = 0x4000, scoped, tag = 'output window, operand 0, single buffered']
    #allocation3 [shape = 's32[1]{0}', space=sflag, size = 0x4, scoped, tag = 'scoped memory for tpu_custom_call.1']
    %7 = vsyncpa [#allocation3], 0
    // Predicated region
    $region2: #{tpu_custom_call.1} parent=1 // pred_check
      _
    $region3: #{tpu_custom_call.1} parent=1 // pred_check_branch
      %9 = sbr.rel (0) target = $region5
    $region4: #{tpu_custom_call.1} parent=1 // pred_region
      _
    $region5: #{tpu_custom_call.1} parent=1 // pred_fallthru
      _
    // Predicated region
    $region6: #{tpu_custom_call.1} parent=1 // pred_check
      _
    $region7: #{tpu_custom_call.1} parent=1 // pred_check_branch
      %11 = sbr.rel (0) target = $region9
    $region8: #{tpu_custom_call.1} parent=1 // pred_region
      _
    $region9: #{tpu_custom_call.1} parent=1 // pred_fallthru
      _
    %v12 = vld [vmem:[%s0] sm:$0xff]
    %v13 = vld [vmem:[%s0 + $0x8] sm:$0xff]
    %v14 = vld [vmem:[%s1] sm:$0xff]
    %v15 = vld [vmem:[%s1 + $0x8] sm:$0xff]
    %v16 = vld [vmem:[%s1 + $0x10] sm:$0xff]
    %v17 = vld [vmem:[%s1 + $0x18] sm:$0xff]
    %v18 = vld [vmem:[%s1 + $0x20] sm:$0xff]
    %v19 = vld [vmem:[%s1 + $0x28] sm:$0xff]
    %v20 = vld [vmem:[%s1 + $0x30] sm:$0xff]
    %v21 = vld [vmem:[%s1 + $0x38] sm:$0xff]
    %v22 = vld [vmem:[%s1 + $0x40] sm:$0xff]
    %v23 = vld [vmem:[%s1 + $0x48] sm:$0xff]
    %v24 = vld [vmem:[%s1 + $0x50] sm:$0xff]
    %v25 = vld [vmem:[%s1 + $0x58] sm:$0xff]
    %v26 = vld [vmem:[%s1 + $0x60] sm:$0xff]
    %v27 = vld [vmem:[%s1 + $0x68] sm:$0xff]
    %v28 = vld [vmem:[%s1 + $0x70] sm:$0xff]
    %v29 = vld [vmem:[%s1 + $0x78] sm:$0xff]
    %v30 = vld [vmem:[%s1 + $0x80] sm:$0xff]
    %v31 = vld [vmem:[%s1 + $0x88] sm:$0xff]
    %v32 = vld [vmem:[%s1 + $0x90] sm:$0xff]
    %v33 = vld [vmem:[%s1 + $0x98] sm:$0xff]
    %v34 = vld [vmem:[%s1 + $0xa0] sm:$0xff]
    %v35 = vld [vmem:[%s1 + $0xa8] sm:$0xff]
    %v36 = vld [vmem:[%s1 + $0xb0] sm:$0xff]
    %v37 = vld [vmem:[%s1 + $0xb8] sm:$0xff]
    %v38 = vld [vmem:[%s1 + $0xc0] sm:$0xff]
    %v39 = vld [vmem:[%s1 + $0xc8] sm:$0xff]
    %v40 = vld [vmem:[%s1 + $0xd0] sm:$0xff]
    %v41 = vld [vmem:[%s1 + $0xd8] sm:$0xff]
    %v42 = vld [vmem:[%s1 + $0xe0] sm:$0xff]
    %v43 = vld [vmem:[%s1 + $0xe8] sm:$0xff]
    %v44 = vld [vmem:[%s1 + $0xf0] sm:$0xff]
    %v45 = vld [vmem:[%s1 + $0xf8] sm:$0xff]
    %vm46 = vcmask 261120
    %v48 = vsel %vm46, %v12, 0
    %v51 = vsel %vm46, %v13, 0
    %v54 = vsel %vm46, %v14, 0
    %v57 = vsel %vm46, %v15, 0
    %v60 = vsel %vm46, %v16, 0
    %v63 = vsel %vm46, %v17, 0
    %v66 = vsel %vm46, %v18, 0
    %v69 = vsel %vm46, %v19, 0
    %v72 = vsel %vm46, %v20, 0
    %v75 = vsel %vm46, %v21, 0
    %v78 = vsel %vm46, %v22, 0
    %v81 = vsel %vm46, %v23, 0
    %v84 = vsel %vm46, %v24, 0
    %v87 = vsel %vm46, %v25, 0
    %v90 = vsel %vm46, %v26, 0
    %v93 = vsel %vm46, %v27, 0
    %v96 = vsel %vm46, %v28, 0
    %v99 = vsel %vm46, %v29, 0
    %v102 = vsel %vm46, %v30, 0
    %v105 = vsel %vm46, %v31, 0
    %v108 = vsel %vm46, %v32, 0
    %v111 = vsel %vm46, %v33, 0
    %v114 = vsel %vm46, %v34, 0
    %v117 = vsel %vm46, %v35, 0
    %v120 = vsel %vm46, %v36, 0
    %v123 = vsel %vm46, %v37, 0
    %v126 = vsel %vm46, %v38, 0
    %v129 = vsel %vm46, %v39, 0
    %v132 = vsel %vm46, %v40, 0
    %v135 = vsel %vm46, %v41, 0
    %v138 = vsel %vm46, %v42, 0
    %v141 = vsel %vm46, %v43, 0
    %v144 = vsel %vm46, %v44, 0
    %v147 = vsel %vm46, %v45, 0
    %149 = vmatprep.subr.mxu0 0.0
    %150 = vmatpush1.xpose.msra.mxu0 %v54
    %151 = vmatprep.subr.mxu0 0.0
    %152 = vmatpush1.xpose.msra.mxu0 %v57
    %153 = vmatprep.subr.mxu0 0.0
    %154 = vmatpush1.xpose.msra.mxu0 %v60
    %155 = vmatprep.subr.mxu0 0.0
    %156 = vmatpush1.xpose.msra.mxu0 %v63
    %157 = vmatprep.subr.mxu0 0.0
    %158 = vmatpush1.xpose.msra.mxu0 %v66
    %159 = vmatprep.subr.mxu0 0.0
    %160 = vmatpush1.xpose.msra.mxu0 %v69
    %161 = vmatprep.subr.mxu0 0.0
    %162 = vmatpush1.xpose.msra.mxu0 %v72
    %163 = vmatprep.subr.mxu0 0.0
    %164 = vmatpush1.xpose.msra.mxu0 %v75
    %165 = vmatprep.subr.mxu0 0.0
    %166 = vmatpush1.xpose.msra.mxu0 %v78
    %167 = vmatprep.subr.mxu0 0.0
    %168 = vmatpush1.xpose.msra.mxu0 %v81
    %169 = vmatprep.subr.mxu0 0.0
    %170 = vmatpush1.xpose.msra.mxu0 %v84
    %171 = vmatprep.subr.mxu0 0.0
    %172 = vmatpush1.xpose.msra.mxu0 %v87
    %173 = vmatprep.subr.mxu0 0.0
    %174 = vmatpush1.xpose.msra.mxu0 %v90
    %175 = vmatprep.subr.mxu0 0.0
    %176 = vmatpush1.xpose.msra.mxu0 %v93
    %177 = vmatprep.subr.mxu0 0.0
    %178 = vmatpush1.xpose.msra.mxu0 %v96
    %179 = vmatprep.subr.mxu0 0.0
    %180 = vmatpush1.xpose.msra.mxu0 %v99
    %181 = vmatprep.subr.mxu0 0.0
    %182 = vmatpush1.xpose.msra.mxu0 %v102
    %183 = vmatprep.subr.mxu0 0.0
    %184 = vmatpush1.xpose.msra.mxu0 %v105
    %185 = vmatprep.subr.mxu0 0.0
    %186 = vmatpush1.xpose.msra.mxu0 %v108
    %187 = vmatprep.subr.mxu0 0.0
    %188 = vmatpush1.xpose.msra.mxu0 %v111
    %189 = vmatprep.subr.mxu0 0.0
    %190 = vmatpush1.xpose.msra.mxu0 %v114
    %191 = vmatprep.subr.mxu0 0.0
    %192 = vmatpush1.xpose.msra.mxu0 %v117
    %193 = vmatprep.subr.mxu0 0.0
    %194 = vmatpush1.xpose.msra.mxu0 %v120
    %195 = vmatprep.subr.mxu0 0.0
    %196 = vmatpush1.xpose.msra.mxu0 %v123
    %197 = vmatprep.subr.mxu0 0.0
    %198 = vmatpush1.xpose.msra.mxu0 %v126
    %199 = vmatprep.subr.mxu0 0.0
    %200 = vmatpush1.xpose.msra.mxu0 %v129
    %201 = vmatprep.subr.mxu0 0.0
    %202 = vmatpush1.xpose.msra.mxu0 %v132
    %203 = vmatprep.subr.mxu0 0.0
    %204 = vmatpush1.xpose.msra.mxu0 %v135
    %205 = vmatprep.subr.mxu0 0.0
    %206 = vmatpush1.xpose.msra.mxu0 %v138
    %207 = vmatprep.subr.mxu0 0.0
    %208 = vmatpush1.xpose.msra.mxu0 %v141
    %209 = vmatprep.subr.mxu0 0.0
    %210 = vmatpush1.xpose.msra.mxu0 %v144
    %211 = vmatprep.subr.mxu0 0.0
    %212 = vmatpush1.xpose.msra.mxu0 %v147
    %213 = vmatprep.mubr.f32.mxu0 0.0
    %214 = vmatmul.mubr.f32.gmra.mrb[0].mxu0 %v48
    %v215 = vpop.f32.mrb[0].mxu0
    %v216 = vadd.f32 0.0, %v215
    %v217 = vpop.f32.mrb[0].mxu0
    %v218 = vadd.f32 0.0, %v217
    %219 = vmatprep.mubr.f32.mxu0 0.0
    %220 = vmatmul.mubr.f32.gmra.mrb[0].mxu0 %v51
    %v221 = vpop.f32.mrb[0].mxu0
    %v222 = vadd.f32 0.0, %v221
    %v223 = vpop.f32.mrb[0].mxu0
    %v224 = vadd.f32 0.0, %v223
    %225 = vdwg.mxu0
    %226 = vst [vmem:[#allocation2] sm:$0xff] %v216
    %227 = vst [vmem:[#allocation2 + $0x8] sm:$0xff] %v218
    %228 = vst [vmem:[#allocation2 + $0x10] sm:$0xff] %v222
    %229 = vst [vmem:[#allocation2 + $0x18] sm:$0xff] %v224
    // Predicated region
    $region10: #{tpu_custom_call.1} parent=1 // pred_check
      _
    $region11: #{tpu_custom_call.1} parent=1 // pred_check_branch
      %231 = sbr.rel (0) target = $region13
    $region12: #{tpu_custom_call.1} parent=1 // pred_region
      %s233 = ssub.s32 512, 512
      %234 = vsyncadd [#allocation3], %s233
      %s235 = sshll.u32 [#allocation2], 4
      %s236 = int_to_ptr.vmem [resolvable:$true] %s235
      %241 = dma.vmem_to_hbm [thread:$0]  %s236, 512, %s2, [#allocation3], 256, 256, 16
    $region13: #{tpu_custom_call.1} parent=1 // pred_fallthru
      _
    // Predicated region
    $region14: #{tpu_custom_call.1} parent=1 // pred_check
      _
    $region15: #{tpu_custom_call.1} parent=1 // pred_check_branch
      %243 = sbr.rel (0) target = $region17
    $region16: #{tpu_custom_call.1} parent=1 // pred_region
      %244 = dma.done [#allocation3], 512
    $region17: #{tpu_custom_call.1} parent=1 // pred_fallthru
      _
    %245 = vsyncpa [#allocation3], 1

</llo_original>
